<compile_context>
chip_gen: v7x
topology: tpu7x:2x2x1
jax: 0.10.0
libtpu: 0.0.40
codegen_flags: <defaults>
</compile_context>

<pallas_src>
import jax
import jax.numpy as jnp
import numpy as np
from jax.experimental import pallas as pl
from jax.experimental.pallas import tpu as pltpu

TETRA_PERMS = (
    (0, 1, 2, 3), (0, 2, 3, 1), (0, 3, 1, 2), (1, 0, 3, 2),
    (1, 2, 0, 3), (1, 3, 2, 0), (2, 0, 1, 3), (2, 1, 3, 0),
    (2, 3, 0, 1), (3, 0, 2, 1), (3, 1, 0, 2), (3, 2, 1, 0),
)
BN_EPS = 1e-5


def tetra_permuter_kernel(xb_ref, wbig_ref, bbig_ref, w1t_ref, b1_ref,
                          w2t_ref, b2_ref, out_ref, h_scr):
    H = out_ref.shape[-1]
    tm = out_ref.shape[0]

    # One lane-dense MXU matmul computes every (neighbour slot j, linear p) product:
    # columns (j*4+p)*H : (j*4+p+1)*H of h_scr hold tanh(x[:, j, :] @ W_p^T + b_p).
    xb = xb_ref[...]                                        # (tm, 4H), lane-dense load
    h_scr[...] = jnp.tanh(
        jnp.dot(xb, wbig_ref[...], preferred_element_type=jnp.float32)
        + bbig_ref[...])                                    # (tm, 16H), lane-dense tanh

    # nei = sum over the 12 tetrahedral permutations of relu(sum_p h[perm[p], p]).
    acc = jnp.zeros((tm, H), jnp.float32)
    for perm in TETRA_PERMS:                                # static, fully unrolled
        s = (h_scr[:, (perm[0] * 4 + 0) * H:(perm[0] * 4 + 1) * H]
             + h_scr[:, (perm[1] * 4 + 1) * H:(perm[1] * 4 + 2) * H]
             + h_scr[:, (perm[2] * 4 + 2) * H:(perm[2] * 4 + 3) * H]
             + h_scr[:, (perm[3] * 4 + 3) * H:(perm[3] * 4 + 4) * H])
        acc = acc + jnp.maximum(s, 0.0)
    nei = acc * (1.0 / 3.0)

    # mlp_out: Linear -> BatchNorm1d (eval stats folded into W1/b1) -> ReLU -> Linear
    mdt = w1t_ref.dtype
    h1 = jnp.dot(nei.astype(mdt), w1t_ref[...],
                 preferred_element_type=jnp.float32) + b1_ref[...]
    hr = jnp.maximum(h1, 0.0)
    out = jnp.dot(hr.astype(mdt), w2t_ref[...],
                  preferred_element_type=jnp.float32) + b2_ref[...]
    out_ref[...] = out.astype(out_ref.dtype)


def run_pallas(x, p, *, tm=512, matmul_dtype=jnp.float32):
    N, four, H = x.shape
    assert four == 4

    # Large row tiles amortize per-grid-step overhead; clamp for tiny inputs and keep
    # the tile a multiple of 8 sublanes. N is padded up (pl.cdiv), not asserted.
    tm = min(tm, ((N + 7) // 8) * 8)
    tm = max(8, ((tm + 7) // 8) * 8)
    n_tiles = pl.cdiv(N, tm)
    Np = n_tiles * tm

    # Lane-dense input layout: (N, 4, H) -> (N, 4H) is a row-major no-op reshape.
    xb = x.reshape(N, 4 * H)
    if Np != N:
        xb = jnp.pad(xb, ((0, Np - N), (0, 0)))

    f32 = jnp.float32
    wbt = p["wbt"].astype(f32)                      # (4, H, H), already W_p^T
    bb = p["bb"].astype(f32)                        # (4, H)

    # Block weight (4H, 16H) so one matmul with a 4H-wide contraction yields all 16 linears.
    wbig = jnp.zeros((4 * H, 16 * H), f32)
    for j in range(4):
        for q in range(4):
            wbig = wbig.at[j * H:(j + 1) * H,
                           (j * 4 + q) * H:(j * 4 + q + 1) * H].set(wbt[q])
    bbig = jnp.tile(bb.reshape(1, 4 * H), (1, 4))   # (1, 16H): block (j*4+q) gets b_q

    # Fold eval-mode BatchNorm (running stats) into the first MLP linear.
    scale = p["gamma"] * jax.lax.rsqrt(p["var"] + BN_EPS)     # (1, H)
    shift = p["beta"] - p["mean"] * scale                     # (1, H)
    w1tf = p["w1t"].astype(f32) * scale                       # scale output features
    b1f = p["b1"].astype(f32) * scale + shift

    mdt = jnp.dtype(matmul_dtype)   # bf16 on v6e/v7x for MXU operands; elementwise stays f32
    xb_c = xb.astype(mdt)
    wbig_c = wbig.astype(mdt)
    w1tf_c = w1tf.astype(mdt)
    w2t_c = p["w2t"].astype(mdt)
    b2 = p["b2"].astype(f32)

    flops = 2 * Np * (4 * H) * (16 * H) + 4 * Np * H * H + 60 * Np * H
    transcendentals = 16 * Np * H
    bytes_accessed = (Np * 4 * H + 64 * H * H + 2 * H * H) * mdt.itemsize + Np * H * 4

    out = pl.pallas_call(
        tetra_permuter_kernel,
        out_shape=jax.ShapeDtypeStruct((Np, H), x.dtype),
        grid=(Np // tm,),
        in_specs=[
            pl.BlockSpec((tm, 4 * H), lambda i: (i, 0)),        # x tiles, lane-dense
            pl.BlockSpec((4 * H, 16 * H), lambda i: (0, 0)),    # block weight (grid-invariant)
            pl.BlockSpec((1, 16 * H), lambda i: (0, 0)),        # block bias
            pl.BlockSpec((H, H), lambda i: (0, 0)),             # mlp W1^T (BN folded)
            pl.BlockSpec((1, H), lambda i: (0, 0)),             # mlp b1 (BN folded)
            pl.BlockSpec((H, H), lambda i: (0, 0)),             # mlp W2^T
            pl.BlockSpec((1, H), lambda i: (0, 0)),             # mlp b2
        ],
        out_specs=pl.BlockSpec((tm, H), lambda i: (i, 0)),
        scratch_shapes=[pltpu.VMEM((tm, 16 * H), jnp.float32)],
        compiler_params=pltpu.CompilerParams(
            dimension_semantics=("parallel",)),
        cost_estimate=pl.CostEstimate(
            flops=int(flops), transcendentals=int(transcendentals),
            bytes_accessed=int(bytes_accessed)),
    )(xb_c, wbig_c, bbig, w1tf_c, b1f, w2t_c, b2)
    return out[:N]


def init_params(key, H):
    """Deterministic synthetic init mirroring the module's __init__/reset_parameters."""
    ks = jax.random.split(key, 16)

    def uni(k, shape, bound):
        return jax.random.uniform(k, shape, jnp.float32, -bound, bound)

    wbt, bb = [], []
    gain = 0.5
    for i in range(4):
        xavier_bound = gain * np.sqrt(6.0 / (H + H))          # xavier_uniform_(gain)
        w = uni(ks[i], (H, H), xavier_bound)                  # torch weight [out, in]
        wbt.append(w.T)                                        # store transposed
        bb.append(uni(ks[4 + i], (H,), 1.0 / np.sqrt(H)))      # default Linear bias init
        gain += 0.5

    lin_bound = 1.0 / np.sqrt(H)                               # default Linear init
    w1 = uni(ks[8], (H, H), lin_bound)
    b1 = uni(ks[9], (H,), lin_bound)
    w2 = uni(ks[10], (H, H), lin_bound)
    b2 = uni(ks[11], (H,), lin_bound)

    return {
        "wbt": jnp.stack(wbt),                     # (4, H, H)
        "bb": jnp.stack(bb),                       # (4, H)
        "w1t": w1.T, "b1": b1.reshape(1, H),
        "gamma": jnp.ones((1, H), jnp.float32),
        "beta": jnp.zeros((1, H), jnp.float32),
        "mean": jnp.zeros((1, H), jnp.float32),
        "var": jnp.ones((1, H), jnp.float32),
        "w2t": w2.T, "b2": b2.reshape(1, H),
    }


def reference(x, p):
    """Pure-JAX mirror of the PyTorch forward (eval mode), BN kept explicit."""
    perms = jnp.array(TETRA_PERMS)
    xp = x[:, perms, :]                                        # (N, 12, 4, H)
    msgs = sum(jnp.tanh(xp[:, :, i, :] @ p["wbt"][i] + p["bb"][i]) for i in range(4))
    nei = jnp.sum(jax.nn.relu(msgs), axis=1) / 3.0             # (N, H)
    h1 = nei @ p["w1t"] + p["b1"][0]
    hn = (h1 - p["mean"][0]) / jnp.sqrt(p["var"][0] + BN_EPS) * p["gamma"][0] + p["beta"][0]
    return jax.nn.relu(hn) @ p["w2t"] + p["b2"][0]


if __name__ == "__main__":
    H = 32     # hidden
    N = 10     # number of tetra centers; deliberately not a tile multiple (exercises padding)
    key = jax.random.PRNGKey(0)
    kx, kp = jax.random.split(key)
    x = jax.random.normal(kx, (N, 4, H), dtype=jnp.float32)
    params = init_params(kp, H)

    out = run_pallas(x, params)           # default tm=512 auto-clamps for tiny N
    jax.block_until_ready(out)

    ref = reference(x, params)
    np.testing.assert_allclose(np.asarray(out), np.asarray(ref), rtol=2e-2, atol=2e-3)
    print("KERNEL_OK")
</pallas_src>

<mosaic_0001>
module attributes {stable_mosaic.version = 11 : i64} {
  func.func @tetra_permuter_kernel(%arg0: i32, %arg1: memref<16x128xf32, #tpu.memory_space<vmem>>, %arg2: memref<128x512xf32, #tpu.memory_space<vmem>>, %arg3: memref<1x512xf32, #tpu.memory_space<vmem>>, %arg4: memref<32x32xf32, #tpu.memory_space<vmem>>, %arg5: memref<1x32xf32, #tpu.memory_space<vmem>>, %arg6: memref<32x32xf32, #tpu.memory_space<vmem>>, %arg7: memref<1x32xf32, #tpu.memory_space<vmem>>, %arg8: memref<16x32xf32, #tpu.memory_space<vmem>>, %arg9: memref<16x512xf32, #tpu.memory_space<vmem>>) attributes {dimension_semantics = [#tpu.dimension_semantics<parallel>], iteration_bounds = array<i64: 1>, scalar_prefetch = 0 : i64, scratch_operands = 1 : i64, tpu.core_type = #tpu.core_type<tc>, window_params = [{transform_indices = @transform_0, window_bounds = array<i64: 16, 128>}, {pipeline_mode = #tpu.pipeline_mode<synchronous>, transform_indices = @transform_1, window_bounds = array<i64: 128, 512>}, {pipeline_mode = #tpu.pipeline_mode<synchronous>, transform_indices = @transform_2, window_bounds = array<i64: 1, 512>}, {pipeline_mode = #tpu.pipeline_mode<synchronous>, transform_indices = @transform_3, window_bounds = array<i64: 32, 32>}, {pipeline_mode = #tpu.pipeline_mode<synchronous>, transform_indices = @transform_4, window_bounds = array<i64: 1, 32>}, {pipeline_mode = #tpu.pipeline_mode<synchronous>, transform_indices = @transform_5, window_bounds = array<i64: 32, 32>}, {pipeline_mode = #tpu.pipeline_mode<synchronous>, transform_indices = @transform_6, window_bounds = array<i64: 1, 32>}, {transform_indices = @transform_7, window_bounds = array<i64: 16, 32>}]} {
    %c0 = arith.constant 0 : index
    %c0_0 = arith.constant 0 : index
    %0 = vector.load %arg1[%c0, %c0_0] : memref<16x128xf32, #tpu.memory_space<vmem>>, vector<16x128xf32>
    %c0_1 = arith.constant 0 : index
    %c0_2 = arith.constant 0 : index
    %1 = vector.load %arg2[%c0_1, %c0_2] : memref<128x512xf32, #tpu.memory_space<vmem>>, vector<128x512xf32>
    %cst = arith.constant dense<0.000000e+00> : vector<16x512xf32>
    %2 = tpu.matmul %0, %1, %cst {dimension_numbers = #tpu.dot_dimension_numbers<[1], [0], [0], [1], [0, 0, 1, 1], [], []>} : vector<16x128xf32>, vector<128x512xf32>, vector<16x512xf32> -> vector<16x512xf32>
    %c0_3 = arith.constant 0 : index
    %c0_4 = arith.constant 0 : index
    %3 = vector.load %arg3[%c0_3, %c0_4] : memref<1x512xf32, #tpu.memory_space<vmem>>, vector<1x512xf32>
    %4 = vector.broadcast %3 : vector<1x512xf32> to vector<16x512xf32>
    %5 = arith.addf %2, %4 : vector<16x512xf32>
    %6 = math.tanh %5 : vector<16x512xf32>
    %c0_5 = arith.constant 0 : index
    %c0_6 = arith.constant 0 : index
    %7 = vector.load %arg9[%c0_5, %c0_6] : memref<16x512xf32, #tpu.memory_space<vmem>>, vector<16x512xf32>
    tpu.vector_store %arg9[%c0_5, %c0_6], %6 {strides = array<i32>} : memref<16x512xf32, #tpu.memory_space<vmem>>, vector<16x512xf32>,
    %cst_7 = arith.constant 0.000000e+00 : f32
    %8 = vector.broadcast %cst_7 : f32 to vector<16x32xf32>
    %c0_8 = arith.constant 0 : index
    %c0_9 = arith.constant 0 : index
    %9 = vector.load %arg9[%c0_8, %c0_9] : memref<16x512xf32, #tpu.memory_space<vmem>>, vector<16x32xf32>
    %c0_10 = arith.constant 0 : index
    %c160 = arith.constant 160 : index
    %10 = vector.load %arg9[%c0_10, %c160] : memref<16x512xf32, #tpu.memory_space<vmem>>, vector<16x32xf32>
    %11 = arith.addf %9, %10 : vector<16x32xf32>
    %c0_11 = arith.constant 0 : index
    %c320 = arith.constant 320 : index
    %12 = vector.load %arg9[%c0_11, %c320] : memref<16x512xf32, #tpu.memory_space<vmem>>, vector<16x32xf32>
    %13 = arith.addf %11, %12 : vector<16x32xf32>
    %c0_12 = arith.constant 0 : index
    %c480 = arith.constant 480 : index
    %14 = vector.load %arg9[%c0_12, %c480] : memref<16x512xf32, #tpu.memory_space<vmem>>, vector<16x32xf32>
    %15 = arith.addf %13, %14 : vector<16x32xf32>
    %cst_13 = arith.constant 0.000000e+00 : f32
    %16 = vector.broadcast %cst_13 : f32 to vector<16x32xf32>
    %17 = arith.maximumf %15, %16 : vector<16x32xf32>
    %18 = arith.addf %8, %17 : vector<16x32xf32>
    %c0_14 = arith.constant 0 : index
    %c0_15 = arith.constant 0 : index
    %19 = vector.load %arg9[%c0_14, %c0_15] : memref<16x512xf32, #tpu.memory_space<vmem>>, vector<16x32xf32>
    %c0_16 = arith.constant 0 : index
    %c288 = arith.constant 288 : index
    %20 = vector.load %arg9[%c0_16, %c288] : memref<16x512xf32, #tpu.memory_space<vmem>>, vector<16x32xf32>
    %21 = arith.addf %19, %20 : vector<16x32xf32>
    %c0_17 = arith.constant 0 : index
    %c448 = arith.constant 448 : index
    %22 = vector.load %arg9[%c0_17, %c448] : memref<16x512xf32, #tpu.memory_space<vmem>>, vector<16x32xf32>
    %23 = arith.addf %21, %22 : vector<16x32xf32>
    %c0_18 = arith.constant 0 : index
    %c224 = arith.constant 224 : index
    %24 = vector.load %arg9[%c0_18, %c224] : memref<16x512xf32, #tpu.memory_space<vmem>>, vector<16x32xf32>
    %25 = arith.addf %23, %24 : vector<16x32xf32>
    %cst_19 = arith.constant 0.000000e+00 : f32
    %26 = vector.broadcast %cst_19 : f32 to vector<16x32xf32>
    %27 = arith.maximumf %25, %26 : vector<16x32xf32>
    %28 = arith.addf %18, %27 : vector<16x32xf32>
    %c0_20 = arith.constant 0 : index
    %c0_21 = arith.constant 0 : index
    %29 = vector.load %arg9[%c0_20, %c0_21] : memref<16x512xf32, #tpu.memory_space<vmem>>, vector<16x32xf32>
    %c0_22 = arith.constant 0 : index
    %c416 = arith.constant 416 : index
    %30 = vector.load %arg9[%c0_22, %c416] : memref<16x512xf32, #tpu.memory_space<vmem>>, vector<16x32xf32>
    %31 = arith.addf %29, %30 : vector<16x32xf32>
    %c0_23 = arith.constant 0 : index
    %c192 = arith.constant 192 : index
    %32 = vector.load %arg9[%c0_23, %c192] : memref<16x512xf32, #tpu.memory_space<vmem>>, vector<16x32xf32>
    %33 = arith.addf %31, %32 : vector<16x32xf32>
    %c0_24 = arith.constant 0 : index
    %c352 = arith.constant 352 : index
    %34 = vector.load %arg9[%c0_24, %c352] : memref<16x512xf32, #tpu.memory_space<vmem>>, vector<16x32xf32>
    %35 = arith.addf %33, %34 : vector<16x32xf32>
    %cst_25 = arith.constant 0.000000e+00 : f32
    %36 = vector.broadcast %cst_25 : f32 to vector<16x32xf32>
    %37 = arith.maximumf %35, %36 : vector<16x32xf32>
    %38 = arith.addf %28, %37 : vector<16x32xf32>
    %c0_26 = arith.constant 0 : index
    %c128 = arith.constant 128 : index
    %39 = vector.load %arg9[%c0_26, %c128] : memref<16x512xf32, #tpu.memory_space<vmem>>, vector<16x32xf32>
    %c0_27 = arith.constant 0 : index
    %c32 = arith.constant 32 : index
    %40 = vector.load %arg9[%c0_27, %c32] : memref<16x512xf32, #tpu.memory_space<vmem>>, vector<16x32xf32>
    %41 = arith.addf %39, %40 : vector<16x32xf32>
    %c0_28 = arith.constant 0 : index
    %c448_29 = arith.constant 448 : index
    %42 = vector.load %arg9[%c0_28, %c448_29] : memref<16x512xf32, #tpu.memory_space<vmem>>, vector<16x32xf32>
    %43 = arith.addf %41, %42 : vector<16x32xf32>
    %c0_30 = arith.constant 0 : index
    %c352_31 = arith.constant 352 : index
    %44 = vector.load %arg9[%c0_30, %c352_31] : memref<16x512xf32, #tpu.memory_space<vmem>>, vector<16x32xf32>
    %45 = arith.addf %43, %44 : vector<16x32xf32>
    %cst_32 = arith.constant 0.000000e+00 : f32
    %46 = vector.broadcast %cst_32 : f32 to vector<16x32xf32>
    %47 = arith.maximumf %45, %46 : vector<16x32xf32>
    %48 = arith.addf %38, %47 : vector<16x32xf32>
    %c0_33 = arith.constant 0 : index
    %c128_34 = arith.constant 128 : index
    %49 = vector.load %arg9[%c0_33, %c128_34] : memref<16x512xf32, #tpu.memory_space<vmem>>, vector<16x32xf32>
    %c0_35 = arith.constant 0 : index
    %c288_36 = arith.constant 288 : index
    %50 = vector.load %arg9[%c0_35, %c288_36] : memref<16x512xf32, #tpu.memory_space<vmem>>, vector<16x32xf32>
    %51 = arith.addf %49, %50 : vector<16x32xf32>
    %c0_37 = arith.constant 0 : index
    %c64 = arith.constant 64 : index
    %52 = vector.load %arg9[%c0_37, %c64] : memref<16x512xf32, #tpu.memory_space<vmem>>, vector<16x32xf32>
    %53 = arith.addf %51, %52 : vector<16x32xf32>
    %c0_38 = arith.constant 0 : index
    %c480_39 = arith.constant 480 : index
    %54 = vector.load %arg9[%c0_38, %c480_39] : memref<16x512xf32, #tpu.memory_space<vmem>>, vector<16x32xf32>
    %55 = arith.addf %53, %54 : vector<16x32xf32>
    %cst_40 = arith.constant 0.000000e+00 : f32
    %56 = vector.broadcast %cst_40 : f32 to vector<16x32xf32>
    %57 = arith.maximumf %55, %56 : vector<16x32xf32>
    %58 = arith.addf %48, %57 : vector<16x32xf32>
    %c0_41 = arith.constant 0 : index
    %c128_42 = arith.constant 128 : index
    %59 = vector.load %arg9[%c0_41, %c128_42] : memref<16x512xf32, #tpu.memory_space<vmem>>, vector<16x32xf32>
    %c0_43 = arith.constant 0 : index
    %c416_44 = arith.constant 416 : index
    %60 = vector.load %arg9[%c0_43, %c416_44] : memref<16x512xf32, #tpu.memory_space<vmem>>, vector<16x32xf32>
    %61 = arith.addf %59, %60 : vector<16x32xf32>
    %c0_45 = arith.constant 0 : index
    %c320_46 = arith.constant 320 : index
    %62 = vector.load %arg9[%c0_45, %c320_46] : memref<16x512xf32, #tpu.memory_space<vmem>>, vector<16x32xf32>
    %63 = arith.addf %61, %62 : vector<16x32xf32>
    %c0_47 = arith.constant 0 : index
    %c96 = arith.constant 96 : index
    %64 = vector.load %arg9[%c0_47, %c96] : memref<16x512xf32, #tpu.memory_space<vmem>>, vector<16x32xf32>
    %65 = arith.addf %63, %64 : vector<16x32xf32>
    %cst_48 = arith.constant 0.000000e+00 : f32
    %66 = vector.broadcast %cst_48 : f32 to vector<16x32xf32>
    %67 = arith.maximumf %65, %66 : vector<16x32xf32>
    %68 = arith.addf %58, %67 : vector<16x32xf32>
    %c0_49 = arith.constant 0 : index
    %c256 = arith.constant 256 : index
    %69 = vector.load %arg9[%c0_49, %c256] : memref<16x512xf32, #tpu.memory_space<vmem>>, vector<16x32xf32>
    %c0_50 = arith.constant 0 : index
    %c32_51 = arith.constant 32 : index
    %70 = vector.load %arg9[%c0_50, %c32_51] : memref<16x512xf32, #tpu.memory_space<vmem>>, vector<16x32xf32>
    %71 = arith.addf %69, %70 : vector<16x32xf32>
    %c0_52 = arith.constant 0 : index
    %c192_53 = arith.constant 192 : index
    %72 = vector.load %arg9[%c0_52, %c192_53] : memref<16x512xf32, #tpu.memory_space<vmem>>, vector<16x32xf32>
    %73 = arith.addf %71, %72 : vector<16x32xf32>
    %c0_54 = arith.constant 0 : index
    %c480_55 = arith.constant 480 : index
    %74 = vector.load %arg9[%c0_54, %c480_55] : memref<16x512xf32, #tpu.memory_space<vmem>>, vector<16x32xf32>
    %75 = arith.addf %73, %74 : vector<16x32xf32>
    %cst_56 = arith.constant 0.000000e+00 : f32
    %76 = vector.broadcast %cst_56 : f32 to vector<16x32xf32>
    %77 = arith.maximumf %75, %76 : vector<16x32xf32>
    %78 = arith.addf %68, %77 : vector<16x32xf32>
    %c0_57 = arith.constant 0 : index
    %c256_58 = arith.constant 256 : index
    %79 = vector.load %arg9[%c0_57, %c256_58] : memref<16x512xf32, #tpu.memory_space<vmem>>, vector<16x32xf32>
    %c0_59 = arith.constant 0 : index
    %c160_60 = arith.constant 160 : index
    %80 = vector.load %arg9[%c0_59, %c160_60] : memref<16x512xf32, #tpu.memory_space<vmem>>, vector<16x32xf32>
    %81 = arith.addf %79, %80 : vector<16x32xf32>
    %c0_61 = arith.constant 0 : index
    %c448_62 = arith.constant 448 : index
    %82 = vector.load %arg9[%c0_61, %c448_62] : memref<16x512xf32, #tpu.memory_space<vmem>>, vector<16x32xf32>
    %83 = arith.addf %81, %82 : vector<16x32xf32>
    %c0_63 = arith.constant 0 : index
    %c96_64 = arith.constant 96 : index
    %84 = vector.load %arg9[%c0_63, %c96_64] : memref<16x512xf32, #tpu.memory_space<vmem>>, vector<16x32xf32>
    %85 = arith.addf %83, %84 : vector<16x32xf32>
    %cst_65 = arith.constant 0.000000e+00 : f32
    %86 = vector.broadcast %cst_65 : f32 to vector<16x32xf32>
    %87 = arith.maximumf %85, %86 : vector<16x32xf32>
    %88 = arith.addf %78, %87 : vector<16x32xf32>
    %c0_66 = arith.constant 0 : index
    %c256_67 = arith.constant 256 : index
    %89 = vector.load %arg9[%c0_66, %c256_67] : memref<16x512xf32, #tpu.memory_space<vmem>>, vector<16x32xf32>
    %c0_68 = arith.constant 0 : index
    %c416_69 = arith.constant 416 : index
    %90 = vector.load %arg9[%c0_68, %c416_69] : memref<16x512xf32, #tpu.memory_space<vmem>>, vector<16x32xf32>
    %91 = arith.addf %89, %90 : vector<16x32xf32>
    %c0_70 = arith.constant 0 : index
    %c64_71 = arith.constant 64 : index
    %92 = vector.load %arg9[%c0_70, %c64_71] : memref<16x512xf32, #tpu.memory_space<vmem>>, vector<16x32xf32>
    %93 = arith.addf %91, %92 : vector<16x32xf32>
    %c0_72 = arith.constant 0 : index
    %c224_73 = arith.constant 224 : index
    %94 = vector.load %arg9[%c0_72, %c224_73] : memref<16x512xf32, #tpu.memory_space<vmem>>, vector<16x32xf32>
    %95 = arith.addf %93, %94 : vector<16x32xf32>
    %cst_74 = arith.constant 0.000000e+00 : f32
    %96 = vector.broadcast %cst_74 : f32 to vector<16x32xf32>
    %97 = arith.maximumf %95, %96 : vector<16x32xf32>
    %98 = arith.addf %88, %97 : vector<16x32xf32>
    %c0_75 = arith.constant 0 : index
    %c384 = arith.constant 384 : index
    %99 = vector.load %arg9[%c0_75, %c384] : memref<16x512xf32, #tpu.memory_space<vmem>>, vector<16x32xf32>
    %c0_76 = arith.constant 0 : index
    %c32_77 = arith.constant 32 : index
    %100 = vector.load %arg9[%c0_76, %c32_77] : memref<16x512xf32, #tpu.memory_space<vmem>>, vector<16x32xf32>
    %101 = arith.addf %99, %100 : vector<16x32xf32>
    %c0_78 = arith.constant 0 : index
    %c320_79 = arith.constant 320 : index
    %102 = vector.load %arg9[%c0_78, %c320_79] : memref<16x512xf32, #tpu.memory_space<vmem>>, vector<16x32xf32>
    %103 = arith.addf %101, %102 : vector<16x32xf32>
    %c0_80 = arith.constant 0 : index
    %c224_81 = arith.constant 224 : index
    %104 = vector.load %arg9[%c0_80, %c224_81] : memref<16x512xf32, #tpu.memory_space<vmem>>, vector<16x32xf32>
    %105 = arith.addf %103, %104 : vector<16x32xf32>
    %cst_82 = arith.constant 0.000000e+00 : f32
    %106 = vector.broadcast %cst_82 : f32 to vector<16x32xf32>
    %107 = arith.maximumf %105, %106 : vector<16x32xf32>
    %108 = arith.addf %98, %107 : vector<16x32xf32>
    %c0_83 = arith.constant 0 : index
    %c384_84 = arith.constant 384 : index
    %109 = vector.load %arg9[%c0_83, %c384_84] : memref<16x512xf32, #tpu.memory_space<vmem>>, vector<16x32xf32>
    %c0_85 = arith.constant 0 : index
    %c160_86 = arith.constant 160 : index
    %110 = vector.load %arg9[%c0_85, %c160_86] : memref<16x512xf32, #tpu.memory_space<vmem>>, vector<16x32xf32>
    %111 = arith.addf %109, %110 : vector<16x32xf32>
    %c0_87 = arith.constant 0 : index
    %c64_88 = arith.constant 64 : index
    %112 = vector.load %arg9[%c0_87, %c64_88] : memref<16x512xf32, #tpu.memory_space<vmem>>, vector<16x32xf32>
    %113 = arith.addf %111, %112 : vector<16x32xf32>
    %c0_89 = arith.constant 0 : index
    %c352_90 = arith.constant 352 : index
    %114 = vector.load %arg9[%c0_89, %c352_90] : memref<16x512xf32, #tpu.memory_space<vmem>>, vector<16x32xf32>
    %115 = arith.addf %113, %114 : vector<16x32xf32>
    %cst_91 = arith.constant 0.000000e+00 : f32
    %116 = vector.broadcast %cst_91 : f32 to vector<16x32xf32>
    %117 = arith.maximumf %115, %116 : vector<16x32xf32>
    %118 = arith.addf %108, %117 : vector<16x32xf32>
    %c0_92 = arith.constant 0 : index
    %c384_93 = arith.constant 384 : index
    %119 = vector.load %arg9[%c0_92, %c384_93] : memref<16x512xf32, #tpu.memory_space<vmem>>, vector<16x32xf32>
    %c0_94 = arith.constant 0 : index
    %c288_95 = arith.constant 288 : index
    %120 = vector.load %arg9[%c0_94, %c288_95] : memref<16x512xf32, #tpu.memory_space<vmem>>, vector<16x32xf32>
    %121 = arith.addf %119, %120 : vector<16x32xf32>
    %c0_96 = arith.constant 0 : index
    %c192_97 = arith.constant 192 : index
    %122 = vector.load %arg9[%c0_96, %c192_97] : memref<16x512xf32, #tpu.memory_space<vmem>>, vector<16x32xf32>
    %123 = arith.addf %121, %122 : vector<16x32xf32>
    %c0_98 = arith.constant 0 : index
    %c96_99 = arith.constant 96 : index
    %124 = vector.load %arg9[%c0_98, %c96_99] : memref<16x512xf32, #tpu.memory_space<vmem>>, vector<16x32xf32>
    %125 = arith.addf %123, %124 : vector<16x32xf32>
    %cst_100 = arith.constant 0.000000e+00 : f32
    %126 = vector.broadcast %cst_100 : f32 to vector<16x32xf32>
    %127 = arith.maximumf %125, %126 : vector<16x32xf32>
    %128 = arith.addf %118, %127 : vector<16x32xf32>
    %cst_101 = arith.constant 0.333333343 : f32
    %129 = vector.broadcast %cst_101 : f32 to vector<16x32xf32>
    %130 = arith.mulf %128, %129 : vector<16x32xf32>
    %c0_102 = arith.constant 0 : index
    %c0_103 = arith.constant 0 : index
    %131 = vector.load %arg4[%c0_102, %c0_103] : memref<32x32xf32, #tpu.memory_space<vmem>>, vector<32x32xf32>
    %cst_104 = arith.constant dense<0.000000e+00> : vector<16x32xf32>
    %132 = tpu.matmul %130, %131, %cst_104 {dimension_numbers = #tpu.dot_dimension_numbers<[1], [0], [0], [1], [0, 0, 1, 1], [], []>} : vector<16x32xf32>, vector<32x32xf32>, vector<16x32xf32> -> vector<16x32xf32>
    %c0_105 = arith.constant 0 : index
    %c0_106 = arith.constant 0 : index
    %133 = vector.load %arg5[%c0_105, %c0_106] : memref<1x32xf32, #tpu.memory_space<vmem>>, vector<1x32xf32>
    %134 = vector.broadcast %133 : vector<1x32xf32> to vector<16x32xf32>
    %135 = arith.addf %132, %134 : vector<16x32xf32>
    %cst_107 = arith.constant 0.000000e+00 : f32
    %136 = vector.broadcast %cst_107 : f32 to vector<16x32xf32>
    %137 = arith.maximumf %135, %136 : vector<16x32xf32>
    %c0_108 = arith.constant 0 : index
    %c0_109 = arith.constant 0 : index
    %138 = vector.load %arg6[%c0_108, %c0_109] : memref<32x32xf32, #tpu.memory_space<vmem>>, vector<32x32xf32>
    %cst_110 = arith.constant dense<0.000000e+00> : vector<16x32xf32>
    %139 = tpu.matmul %137, %138, %cst_110 {dimension_numbers = #tpu.dot_dimension_numbers<[1], [0], [0], [1], [0, 0, 1, 1], [], []>} : vector<16x32xf32>, vector<32x32xf32>, vector<16x32xf32> -> vector<16x32xf32>
    %c0_111 = arith.constant 0 : index
    %c0_112 = arith.constant 0 : index
    %140 = vector.load %arg7[%c0_111, %c0_112] : memref<1x32xf32, #tpu.memory_space<vmem>>, vector<1x32xf32>
    %141 = vector.broadcast %140 : vector<1x32xf32> to vector<16x32xf32>
    %142 = arith.addf %139, %141 : vector<16x32xf32>
    %c0_113 = arith.constant 0 : index
    %c0_114 = arith.constant 0 : index
    %143 = vector.load %arg8[%c0_113, %c0_114] : memref<16x32xf32, #tpu.memory_space<vmem>>, vector<16x32xf32>
    tpu.vector_store %arg8[%c0_113, %c0_114], %142 {strides = array<i32>} : memref<16x32xf32, #tpu.memory_space<vmem>>, vector<16x32xf32>,
    return
  }
  func.func @transform_0(%arg0: i32) -> (i32, i32) {
    %c0_i32 = arith.constant 0 : i32
    %c0_i32_0 = arith.constant 0 : i32
    return %arg0, %c0_i32 : i32, i32
  }
  func.func @transform_1(%arg0: i32) -> (i32, i32) {
    %c0_i32 = arith.constant 0 : i32
    %c0_i32_0 = arith.constant 0 : i32
    %c0_i32_1 = arith.constant 0 : i32
    return %c0_i32, %c0_i32_0 : i32, i32
  }
  func.func @transform_2(%arg0: i32) -> (i32, i32) {
    %c0_i32 = arith.constant 0 : i32
    %c0_i32_0 = arith.constant 0 : i32
    %c0_i32_1 = arith.constant 0 : i32
    return %c0_i32, %c0_i32_0 : i32, i32
  }
  func.func @transform_3(%arg0: i32) -> (i32, i32) {
    %c0_i32 = arith.constant 0 : i32
    %c0_i32_0 = arith.constant 0 : i32
    %c0_i32_1 = arith.constant 0 : i32
    return %c0_i32, %c0_i32_0 : i32, i32
  }
  func.func @transform_4(%arg0: i32) -> (i32, i32) {
    %c0_i32 = arith.constant 0 : i32
    %c0_i32_0 = arith.constant 0 : i32
    %c0_i32_1 = arith.constant 0 : i32
    return %c0_i32, %c0_i32_0 : i32, i32
  }
  func.func @transform_5(%arg0: i32) -> (i32, i32) {
    %c0_i32 = arith.constant 0 : i32
    %c0_i32_0 = arith.constant 0 : i32
    %c0_i32_1 = arith.constant 0 : i32
    return %c0_i32, %c0_i32_0 : i32, i32
  }
  func.func @transform_6(%arg0: i32) -> (i32, i32) {
    %c0_i32 = arith.constant 0 : i32
    %c0_i32_0 = arith.constant 0 : i32
    %c0_i32_1 = arith.constant 0 : i32
    return %c0_i32, %c0_i32_0 : i32, i32
  }
  func.func @transform_7(%arg0: i32) -> (i32, i32) {
    %c0_i32 = arith.constant 0 : i32
    %c0_i32_0 = arith.constant 0 : i32
    return %arg0, %c0_i32 : i32, i32
  }
}

</mosaic_0001>

<llo_original>
// kernel: tpu_custom_call.1
$region0: #{tpu_custom_call.1}
  #allocation0 [shape = 'u32[]', space=smem, size = 0x4, offset = 0x4, fixed_abs, tag = 'smem constant byte address 0x4 - core index']
  #allocation1 [shape = 'u32[144,128]{1,0:T(1,128)}', space=vmem, size = 0x12000, scoped, tag = 'internal scratch']
  #allocation2 [shape = 'f32[16,512]{1,0:T(8,128)}', space=vmem, size = 0x8000, scoped, tag = 'scratch operand']
  %s0 = inlined_call_operand.hbm [shape: f32[16,128], index: 0, kind: input, shape index: {}]
  %s1 = inlined_call_operand.hbm [shape: f32[128,512], index: 1, kind: input, shape index: {}]
  %s2 = inlined_call_operand.vmem [shape: f32[1,512], index: 2, kind: input, shape index: {}]
  %s3 = inlined_call_operand.hbm [shape: f32[32,32], index: 3, kind: input, shape index: {}]
  %s4 = inlined_call_operand.vmem [shape: f32[1,32], index: 4, kind: input, shape index: {}]
  %s5 = inlined_call_operand.hbm [shape: f32[32,32], index: 5, kind: input, shape index: {}]
  %s6 = inlined_call_operand.vmem [shape: f32[1,32], index: 6, kind: input, shape index: {}]
  %s7 = inlined_call_operand.hbm [shape: f32[16,32], index: 7, kind: output, shape index: {}]
  %s8 = sld [smem:[#allocation0]]
  $region54: #{tpu_custom_call.1} parent=0
    _
  %s10 = ssub.s32 1, %s8
  %s11 = scalar_select 0, %s10, %s8
  $region1: #{tpu_custom_call.1} parent=0
    #allocation3 [shape = 'u8[8192]{0}', space=vmem, size = 0x2000, scoped, tag = 'input window, operand 0, single buffered']
    #allocation4 [shape = 's32[1]{0}', space=sflag, size = 0x4, scoped, tag = 'scoped memory for tpu_custom_call.1']
    #allocation5 [shape = 's32[1]{0}', space=sflag, size = 0x4, scoped, tag = 'scoped memory for tpu_custom_call.1']
    #allocation6 [shape = 'u8[262144]{0}', space=vmem, size = 0x40000, scoped, tag = 'input window, operand 1, single buffered']
    #allocation7 [shape = 's32[1]{0}', space=sflag, size = 0x4, scoped, tag = 'scoped memory for tpu_custom_call.1']
    #allocation8 [shape = 'u8[16384]{0}', space=vmem, size = 0x4000, scoped, tag = 'input window, operand 3, single buffered']
    #allocation9 [shape = 'u8[16384]{0}', space=vmem, size = 0x4000, scoped, tag = 'input window, operand 5, single buffered']
    #allocation10 [shape = 's32[1]{0}', space=sflag, size = 0x4, scoped, tag = 'scoped memory for tpu_custom_call.1']
    #allocation11 [shape = 'u8[8192]{0}', space=vmem, size = 0x2000, scoped, tag = 'output window, operand 0, single buffered']
    %12 = vsyncpa [#allocation4], 0
    %13 = vsyncpa [#allocation7], 0
    %14 = vsyncpa [#allocation10], 0
    %15 = vsyncpa [#allocation5], 0
    // Predicated region
    $region2: #{tpu_custom_call.1} parent=1 // pred_check
      _
    $region3: #{tpu_custom_call.1} parent=1 // pred_check_branch
      %17 = sbr.rel (0) target = $region5
    $region4: #{tpu_custom_call.1} parent=1 // pred_region
      %s19 = ssub.s32 256, 256
      %20 = vsyncadd [#allocation4], %s19
      %s21 = sshll.u32 [#allocation3], 4
      %s22 = int_to_ptr.vmem [resolvable:$true] %s21
      %27 = dma.hbm_to_vmem [thread:$0]  %s0, 256, %s22, [#allocation4], 128, 128, 8
    $region5: #{tpu_custom_call.1} parent=1 // pred_fallthru
      _
    // Predicated region
    $region6: #{tpu_custom_call.1} parent=1 // pred_check
      _
    $region7: #{tpu_custom_call.1} parent=1 // pred_check_branch
      %29 = sbr.rel (0) target = $region9
    $region8: #{tpu_custom_call.1} parent=1 // pred_region
      %s31 = ssub.s32 8192, 8192
      %32 = vsyncadd [#allocation7], %s31
      %s33 = sshll.u32 [#allocation6], 4
      %s34 = int_to_ptr.vmem [resolvable:$true] %s33
      %39 = dma.hbm_to_vmem [thread:$0]  %s1, 8192, %s34, [#allocation7], 512, 512, 32
    $region9: #{tpu_custom_call.1} parent=1 // pred_fallthru
      _
    // Predicated region
    $region10: #{tpu_custom_call.1} parent=1 // pred_check
      _
    $region11: #{tpu_custom_call.1} parent=1 // pred_check_branch
      %41 = sbr.rel (0) target = $region13
    $region12: #{tpu_custom_call.1} parent=1 // pred_region
      _
    $region13: #{tpu_custom_call.1} parent=1 // pred_fallthru
      _
    // Predicated region
    $region14: #{tpu_custom_call.1} parent=1 // pred_check
      _
    $region15: #{tpu_custom_call.1} parent=1 // pred_check_branch
      %43 = sbr.rel (0) target = $region17
    $region16: #{tpu_custom_call.1} parent=1 // pred_region
      %s45 = ssub.s32 512, 512
      %46 = vsyncadd [#allocation7], %s45
      %s47 = sshll.u32 [#allocation8], 4
      %s48 = int_to_ptr.vmem [resolvable:$true] %s47
      %53 = dma.hbm_to_vmem [thread:$0]  %s3, 512, %s48, [#allocation7], 128, 128, 8
    $region17: #{tpu_custom_call.1} parent=1 // pred_fallthru
      _
    // Predicated region
    $region18: #{tpu_custom_call.1} parent=1 // pred_check
      _
    $region19: #{tpu_custom_call.1} parent=1 // pred_check_branch
      %55 = sbr.rel (0) target = $region21
    $region20: #{tpu_custom_call.1} parent=1 // pred_region
      _
    $region21: #{tpu_custom_call.1} parent=1 // pred_fallthru
      _
    // Predicated region
    $region22: #{tpu_custom_call.1} parent=1 // pred_check
      _
    $region23: #{tpu_custom_call.1} parent=1 // pred_check_branch
      %57 = sbr.rel (0) target = $region25
    $region24: #{tpu_custom_call.1} parent=1 // pred_region
      %s59 = ssub.s32 512, 512
      %60 = vsyncadd [#allocation10], %s59
      %s61 = sshll.u32 [#allocation9], 4
      %s62 = int_to_ptr.vmem [resolvable:$true] %s61
      %67 = dma.hbm_to_vmem [thread:$0]  %s5, 512, %s62, [#allocation10], 128, 128, 8
    $region25: #{tpu_custom_call.1} parent=1 // pred_fallthru
      _
    // Predicated region
    $region26: #{tpu_custom_call.1} parent=1 // pred_check
      _
    $region27: #{tpu_custom_call.1} parent=1 // pred_check_branch
      %69 = sbr.rel (0) target = $region29
    $region28: #{tpu_custom_call.1} parent=1 // pred_region
      _
    $region29: #{tpu_custom_call.1} parent=1 // pred_fallthru
      _
    // Predicated region
    $region30: #{tpu_custom_call.1} parent=1 // pred_check
      _
    $region31: #{tpu_custom_call.1} parent=1 // pred_check_branch
      %71 = sbr.rel (0) target = $region33
    $region32: #{tpu_custom_call.1} parent=1 // pred_region
      %72 = dma.done [#allocation4], 256
    $region33: #{tpu_custom_call.1} parent=1 // pred_fallthru
      _
    // Predicated region
    $region34: #{tpu_custom_call.1} parent=1 // pred_check
      _
    $region35: #{tpu_custom_call.1} parent=1 // pred_check_branch
      %74 = sbr.rel (0) target = $region37
    $region36: #{tpu_custom_call.1} parent=1 // pred_region
      %75 = dma.done [#allocation7], 8192
    $region37: #{tpu_custom_call.1} parent=1 // pred_fallthru
      _
    // Predicated region
    $region38: #{tpu_custom_call.1} parent=1 // pred_check
      _
    $region39: #{tpu_custom_call.1} parent=1 // pred_check_branch
      %77 = sbr.rel (0) target = $region41
    $region40: #{tpu_custom_call.1} parent=1 // pred_region
      %78 = dma.done [#allocation7], 512
    $region41: #{tpu_custom_call.1} parent=1 // pred_fallthru
      _
    // Predicated region
    $region42: #{tpu_custom_call.1} parent=1 // pred_check
      _
    $region43: #{tpu_custom_call.1} parent=1 // pred_check_branch
      %80 = sbr.rel (0) target = $region45
    $region44: #{tpu_custom_call.1} parent=1 // pred_region
      %81 = dma.done [#allocation10], 512
    $region45: #{tpu_custom_call.1} parent=1 // pred_fallthru
      _
    %v82 = vld [vmem:[#allocation3] sm:$0xff]
    %v83 = vld [vmem:[#allocation3 + $0x8] sm:$0xff]
    %v84 = vld [vmem:[#allocation6] sm:$0xff]
    %v85 = vld [vmem:[#allocation6 + $0x8] sm:$0xff]
    %v86 = vld [vmem:[#allocation6 + $0x10] sm:$0xff]
    %v87 = vld [vmem:[#allocation6 + $0x18] sm:$0xff]
    %v88 = vld [vmem:[#allocation6 + $0x20] sm:$0xff]
    %v89 = vld [vmem:[#allocation6 + $0x28] sm:$0xff]
    %v90 = vld [vmem:[#allocation6 + $0x30] sm:$0xff]
    %v91 = vld [vmem:[#allocation6 + $0x38] sm:$0xff]
    %v92 = vld [vmem:[#allocation6 + $0x40] sm:$0xff]
    %v93 = vld [vmem:[#allocation6 + $0x48] sm:$0xff]
    %v94 = vld [vmem:[#allocation6 + $0x50] sm:$0xff]
    %v95 = vld [vmem:[#allocation6 + $0x58] sm:$0xff]
    %v96 = vld [vmem:[#allocation6 + $0x60] sm:$0xff]
    %v97 = vld [vmem:[#allocation6 + $0x68] sm:$0xff]
    %v98 = vld [vmem:[#allocation6 + $0x70] sm:$0xff]
    %v99 = vld [vmem:[#allocation6 + $0x78] sm:$0xff]
    %v100 = vld [vmem:[#allocation6 + $0x80] sm:$0xff]
    %v101 = vld [vmem:[#allocation6 + $0x88] sm:$0xff]
    %v102 = vld [vmem:[#allocation6 + $0x90] sm:$0xff]
    %v103 = vld [vmem:[#allocation6 + $0x98] sm:$0xff]
    %v104 = vld [vmem:[#allocation6 + $0xa0] sm:$0xff]
    %v105 = vld [vmem:[#allocation6 + $0xa8] sm:$0xff]
    %v106 = vld [vmem:[#allocation6 + $0xb0] sm:$0xff]
    %v107 = vld [vmem:[#allocation6 + $0xb8] sm:$0xff]
    %v108 = vld [vmem:[#allocation6 + $0xc0] sm:$0xff]
    %v109 = vld [vmem:[#allocation6 + $0xc8] sm:$0xff]
    %v110 = vld [vmem:[#allocation6 + $0xd0] sm:$0xff]
    %v111 = vld [vmem:[#allocation6 + $0xd8] sm:$0xff]
    %v112 = vld [vmem:[#allocation6 + $0xe0] sm:$0xff]
    %v113 = vld [vmem:[#allocation6 + $0xe8] sm:$0xff]
    %v114 = vld [vmem:[#allocation6 + $0xf0] sm:$0xff]
    %v115 = vld [vmem:[#allocation6 + $0xf8] sm:$0xff]
    %v116 = vld [vmem:[#allocation6 + $0x100] sm:$0xff]
    %v117 = vld [vmem:[#allocation6 + $0x108] sm:$0xff]
    %v118 = vld [vmem:[#allocation6 + $0x110] sm:$0xff]
    %v119 = vld [vmem:[#allocation6 + $0x118] sm:$0xff]
    %v120 = vld [vmem:[#allocation6 + $0x120] sm:$0xff]
    %v121 = vld [vmem:[#allocation6 + $0x128] sm:$0xff]
    %v122 = vld [vmem:[#allocation6 + $0x130] sm:$0xff]
    %v123 = vld [vmem:[#allocation6 + $0x138] sm:$0xff]
    %v124 = vld [vmem:[#allocation6 + $0x140] sm:$0xff]
    %v125 = vld [vmem:[#allocation6 + $0x148] sm:$0xff]
    %v126 = vld [vmem:[#allocation6 + $0x150] sm:$0xff]
    %v127 = vld [vmem:[#allocation6 + $0x158] sm:$0xff]
    %v128 = vld [vmem:[#allocation6 + $0x160] sm:$0xff]
    %v129 = vld [vmem:[#allocation6 + $0x168] sm:$0xff]
    %v130 = vld [vmem:[#allocation6 + $0x170] sm:$0xff]
    %v131 = vld [vmem:[#allocation6 + $0x178] sm:$0xff]
    %v132 = vld [vmem:[#allocation6 + $0x180] sm:$0xff]
    %v133 = vld [vmem:[#allocation6 + $0x188] sm:$0xff]
    %v134 = vld [vmem:[#allocation6 + $0x190] sm:$0xff]
    %v135 = vld [vmem:[#allocation6 + $0x198] sm:$0xff]
    %v136 = vld [vmem:[#allocation6 + $0x1a0] sm:$0xff]
    %v137 = vld [vmem:[#allocation6 + $0x1a8] sm:$0xff]
    %v138 = vld [vmem:[#allocation6 + $0x1b0] sm:$0xff]
    %v139 = vld [vmem:[#allocation6 + $0x1b8] sm:$0xff]
    %v140 = vld [vmem:[#allocation6 + $0x1c0] sm:$0xff]
    %v141 = vld [vmem:[#allocation6 + $0x1c8] sm:$0xff]
    %v142 = vld [vmem:[#allocation6 + $0x1d0] sm:$0xff]
    %v143 = vld [vmem:[#allocation6 + $0x1d8] sm:$0xff]
    %v144 = vld [vmem:[#allocation6 + $0x1e0] sm:$0xff]
    %v145 = vld [vmem:[#allocation6 + $0x1e8] sm:$0xff]
    %v146 = vld [vmem:[#allocation6 + $0x1f0] sm:$0xff]
    %v147 = vld [vmem:[#allocation6 + $0x1f8] sm:$0xff]
    %v148 = vld [vmem:[%s2] sm:$0xf]
    %v150 = vlaneseq
    %v151 = vshrl.u32 %v150, 7
    %v152 = vsub.s32 0, %v151
    %v153 = vrot.slane %v148, %v152
    %v154 = vlaneseq
    %v155 = vshrl.u32 %v154, 7
    %v156 = vsub.s32 1, %v155
    %v157 = vrot.slane %v148, %v156
    %v158 = vlaneseq
    %v159 = vshrl.u32 %v158, 7
    %v160 = vsub.s32 2, %v159
    %v161 = vrot.slane %v148, %v160
    %v162 = vlaneseq
    %v163 = vshrl.u32 %v162, 7
    %v164 = vsub.s32 3, %v163
    %v165 = vrot.slane %v148, %v164
    %170 = vmatprep.subr.mxu0 %v85
    %171 = vmatpush1.msra.mxu0 %v84
    %172 = vmatprep.subr.mxu0 %v89
    %173 = vmatpush1.msra.mxu0 %v88
    %174 = vmatprep.subr.mxu0 %v93
    %175 = vmatpush1.msra.mxu0 %v92
    %176 = vmatprep.subr.mxu0 %v97
    %177 = vmatpush1.msra.mxu0 %v96
    %178 = vmatprep.subr.mxu0 %v101
    %179 = vmatpush1.msra.mxu0 %v100
    %180 = vmatprep.subr.mxu0 %v105
    %181 = vmatpush1.msra.mxu0 %v104
    %182 = vmatprep.subr.mxu0 %v109
    %183 = vmatpush1.msra.mxu0 %v108
    %184 = vmatprep.subr.mxu0 %v113
    %185 = vmatpush1.msra.mxu0 %v112
    %186 = vmatprep.subr.mxu0 %v117
    %187 = vmatpush1.msra.mxu0 %v116
    %188 = vmatprep.subr.mxu0 %v121
    %189 = vmatpush1.msra.mxu0 %v120
    %190 = vmatprep.subr.mxu0 %v125
    %191 = vmatpush1.msra.mxu0 %v124
    %192 = vmatprep.subr.mxu0 %v129
    %193 = vmatpush1.msra.mxu0 %v128
    %194 = vmatprep.subr.mxu0 %v133
    %195 = vmatpush1.msra.mxu0 %v132
    %196 = vmatprep.subr.mxu0 %v137
    %197 = vmatpush1.msra.mxu0 %v136
    %198 = vmatprep.subr.mxu0 %v141
    %199 = vmatpush1.msra.mxu0 %v140
    %200 = vmatprep.subr.mxu0 %v145
    %201 = vmatpush1.msra.mxu0 %v144
    %202 = vmatprep.subr.mxu0 0.0
    %203 = vmatpush1.msra.mxu0 0.0
    %204 = vmatprep.subr.mxu0 0.0
    %205 = vmatpush1.msra.mxu0 0.0
    %206 = vmatprep.subr.mxu0 0.0
    %207 = vmatpush1.msra.mxu0 0.0
    %208 = vmatprep.subr.mxu0 0.0
    %209 = vmatpush1.msra.mxu0 0.0
    %210 = vmatprep.subr.mxu0 0.0
    %211 = vmatpush1.msra.mxu0 0.0
    %212 = vmatprep.subr.mxu0 0.0
    %213 = vmatpush1.msra.mxu0 0.0
    %214 = vmatprep.subr.mxu0 0.0
    %215 = vmatpush1.msra.mxu0 0.0
    %216 = vmatprep.subr.mxu0 0.0
    %217 = vmatpush1.msra.mxu0 0.0
    %218 = vmatprep.subr.mxu0 0.0
    %219 = vmatpush1.msra.mxu0 0.0
    %220 = vmatprep.subr.mxu0 0.0
    %221 = vmatpush1.msra.mxu0 0.0
    %222 = vmatprep.subr.mxu0 0.0
    %223 = vmatpush1.msra.mxu0 0.0
    %224 = vmatprep.subr.mxu0 0.0
    %225 = vmatpush1.msra.mxu0 0.0
    %226 = vmatprep.subr.mxu0 0.0
    %227 = vmatpush1.msra.mxu0 0.0
    %228 = vmatprep.subr.mxu0 0.0
    %229 = vmatpush1.msra.mxu0 0.0
    %230 = vmatprep.subr.mxu0 0.0
    %231 = vmatpush1.msra.mxu0 0.0
    %232 = vmatprep.subr.mxu0 0.0
    %233 = vmatpush1.msra.mxu0 0.0
    %234 = vmatprep.mubr.f32.mxu0 0.0
    %235 = vmatmul.mubr.f32.gmra.mrb[0].mxu0 %v82
    %v236 = vpop.f32.mrb[0].mxu0
    %v237 = vadd.f32 %v153, %v236
    %v238 = vpop.f32.mrb[0].mxu0
    %v239 = vadd.f32 %v157, %v238
    %240 = vmatprep.mubr.f32.mxu0 0.0
    %241 = vmatmul.mubr.f32.gmra.mrb[0].mxu0 %v83
    %v242 = vpop.f32.mrb[0].mxu0
    %v243 = vadd.f32 %v153, %v242
    %v244 = vpop.f32.mrb[0].mxu0
    %v245 = vadd.f32 %v157, %v244
    %246 = vdwg.mxu0
    %247 = vmatprep.subr.mxu0 %v87
    %248 = vmatpush1.msra.mxu0 %v86
    %249 = vmatprep.subr.mxu0 %v91
    %250 = vmatpush1.msra.mxu0 %v90
    %251 = vmatprep.subr.mxu0 %v95
    %252 = vmatpush1.msra.mxu0 %v94
    %253 = vmatprep.subr.mxu0 %v99
    %254 = vmatpush1.msra.mxu0 %v98
    %255 = vmatprep.subr.mxu0 %v103
    %256 = vmatpush1.msra.mxu0 %v102
    %257 = vmatprep.subr.mxu0 %v107
    %258 = vmatpush1.msra.mxu0 %v106
    %259 = vmatprep.subr.mxu0 %v111
    %260 = vmatpush1.msra.mxu0 %v110
    %261 = vmatprep.subr.mxu0 %v115
    %262 = vmatpush1.msra.mxu0 %v114
    %263 = vmatprep.subr.mxu0 %v119
    %264 = vmatpush1.msra.mxu0 %v118
    %265 = vmatprep.subr.mxu0 %v123
    %266 = vmatpush1.msra.mxu0 %v122
    %267 = vmatprep.subr.mxu0 %v127
    %268 = vmatpush1.msra.mxu0 %v126
    %269 = vmatprep.subr.mxu0 %v131
    %270 = vmatpush1.msra.mxu0 %v130
    %271 = vmatprep.subr.mxu0 %v135
    %272 = vmatpush1.msra.mxu0 %v134
    %273 = vmatprep.subr.mxu0 %v139
    %274 = vmatpush1.msra.mxu0 %v138
    %275 = vmatprep.subr.mxu0 %v143
    %276 = vmatpush1.msra.mxu0 %v142
    %277 = vmatprep.subr.mxu0 %v147
    %278 = vmatpush1.msra.mxu0 %v146
    %279 = vmatprep.subr.mxu0 0.0
    %280 = vmatpush1.msra.mxu0 0.0
    %281 = vmatprep.subr.mxu0 0.0
    %282 = vmatpush1.msra.mxu0 0.0
    %283 = vmatprep.subr.mxu0 0.0
    %284 = vmatpush1.msra.mxu0 0.0
    %285 = vmatprep.subr.mxu0 0.0
    %286 = vmatpush1.msra.mxu0 0.0
    %287 = vmatprep.subr.mxu0 0.0
    %288 = vmatpush1.msra.mxu0 0.0
    %289 = vmatprep.subr.mxu0 0.0
    %290 = vmatpush1.msra.mxu0 0.0
    %291 = vmatprep.subr.mxu0 0.0
    %292 = vmatpush1.msra.mxu0 0.0
    %293 = vmatprep.subr.mxu0 0.0
    %294 = vmatpush1.msra.mxu0 0.0
    %295 = vmatprep.subr.mxu0 0.0
    %296 = vmatpush1.msra.mxu0 0.0
    %297 = vmatprep.subr.mxu0 0.0
    %298 = vmatpush1.msra.mxu0 0.0
    %299 = vmatprep.subr.mxu0 0.0
    %300 = vmatpush1.msra.mxu0 0.0
    %301 = vmatprep.subr.mxu0 0.0
    %302 = vmatpush1.msra.mxu0 0.0
    %303 = vmatprep.subr.mxu0 0.0
    %304 = vmatpush1.msra.mxu0 0.0
    %305 = vmatprep.subr.mxu0 0.0
    %306 = vmatpush1.msra.mxu0 0.0
    %307 = vmatprep.subr.mxu0 0.0
    %308 = vmatpush1.msra.mxu0 0.0
    %309 = vmatprep.subr.mxu0 0.0
    %310 = vmatpush1.msra.mxu0 0.0
    %311 = vmatprep.mubr.f32.mxu0 0.0
    %312 = vmatmul.mubr.f32.gmra.mrb[0].mxu0 %v82
    %v313 = vpop.f32.mrb[0].mxu0
    %v314 = vadd.f32 %v161, %v313
    %v315 = vpop.f32.mrb[0].mxu0
    %v316 = vadd.f32 %v165, %v315
    %317 = vmatprep.mubr.f32.mxu0 0.0
    %318 = vmatmul.mubr.f32.gmra.mrb[0].mxu0 %v83
    %v319 = vpop.f32.mrb[0].mxu0
    %v320 = vadd.f32 %v161, %v319
    %v321 = vpop.f32.mrb[0].mxu0
    %v322 = vadd.f32 %v165, %v321
    %323 = vdwg.mxu0
    %v324 = vtanh.pop %v237
    %v325 = vtanh.pop %v239
    %v326 = vtanh.pop %v314
    %v327 = vtanh.pop %v316
    %v328 = vtanh.pop %v243
    %v329 = vtanh.pop %v245
    %v330 = vtanh.pop %v320
    %v331 = vtanh.pop %v322
    %332 = vst [vmem:[#allocation2] sm:$0xff] %v324
    %333 = vst [vmem:[#allocation2 + $0x8] sm:$0xff] %v325
    %334 = vst [vmem:[#allocation2 + $0x10] sm:$0xff] %v326
    %335 = vst [vmem:[#allocation2 + $0x18] sm:$0xff] %v327
    %336 = vst [vmem:[#allocation2 + $0x20] sm:$0xff] %v328
    %337 = vst [vmem:[#allocation2 + $0x28] sm:$0xff] %v329
    %338 = vst [vmem:[#allocation2 + $0x30] sm:$0xff] %v330
    %339 = vst [vmem:[#allocation2 + $0x38] sm:$0xff] %v331
    %v340 = vld [vmem:[#allocation2] sm:$0xff]
    %v341 = vld [vmem:[#allocation2 + $0x20] sm:$0xff]
    %v342 = vld [vmem:[#allocation2 + $0x8] sm:$0xff]
    %v343 = vld [vmem:[#allocation2 + $0x28] sm:$0xff]
    %346 = vrot.lane.b32.xlu0 %v342, 96
    %v347 = vpop.permute.xlu0 %346
    %348 = vrot.lane.b32.xlu0 %v343, 96
    %v349 = vpop.permute.xlu0 %348
    %v352 = vadd.f32 %v340, %v347
    %v353 = vadd.f32 %v341, %v349
    %v354 = vld [vmem:[#allocation2 + $0x10] sm:$0xff]
    %v355 = vld [vmem:[#allocation2 + $0x30] sm:$0xff]
    %358 = vrot.lane.b32.xlu0 %v354, 64
    %v359 = vpop.permute.xlu0 %358
    %360 = vrot.lane.b32.xlu0 %v355, 64
    %v361 = vpop.permute.xlu0 %360
    %v364 = vadd.f32 %v352, %v359
    %v365 = vadd.f32 %v353, %v361
    %v366 = vld [vmem:[#allocation2 + $0x18] sm:$0xff]
    %v367 = vld [vmem:[#allocation2 + $0x38] sm:$0xff]
    %370 = vrot.lane.b32.xlu0 %v366, 32
    %v371 = vpop.permute.xlu0 %370
    %372 = vrot.lane.b32.xlu0 %v367, 32
    %v373 = vpop.permute.xlu0 %372
    %v376 = vadd.f32 %v364, %v371
    %v377 = vadd.f32 %v365, %v373
    %v378 = vmax.f32 %v376, 0.0
    %v379 = vmax.f32 %v377, 0.0
    %v380 = vadd.f32 %v378, 0.0
    %v381 = vadd.f32 %v379, 0.0
    %382 = vrot.lane.b32.xlu0 %v354, 96
    %v383 = vpop.permute.xlu0 %382
    %384 = vrot.lane.b32.xlu0 %v355, 96
    %v385 = vpop.permute.xlu0 %384
    %v388 = vadd.f32 %v340, %v383
    %v389 = vadd.f32 %v341, %v385
    %390 = vrot.lane.b32.xlu0 %v366, 64
    %v391 = vpop.permute.xlu0 %390
    %392 = vrot.lane.b32.xlu0 %v367, 64
    %v393 = vpop.permute.xlu0 %392
    %v396 = vadd.f32 %v388, %v391
    %v397 = vadd.f32 %v389, %v393
    %398 = vrot.lane.b32.xlu0 %v342, 32
    %v399 = vpop.permute.xlu0 %398
    %400 = vrot.lane.b32.xlu0 %v343, 32
    %v401 = vpop.permute.xlu0 %400
    %v404 = vadd.f32 %v396, %v399
    %v405 = vadd.f32 %v397, %v401
    %v406 = vmax.f32 %v404, 0.0
    %v407 = vmax.f32 %v405, 0.0
    %v408 = vadd.f32 %v380, %v406
    %v409 = vadd.f32 %v381, %v407
    %410 = vrot.lane.b32.xlu0 %v366, 96
    %v411 = vpop.permute.xlu0 %410
    %412 = vrot.lane.b32.xlu0 %v367, 96
    %v413 = vpop.permute.xlu0 %412
    %v416 = vadd.f32 %v340, %v411
    %v417 = vadd.f32 %v341, %v413
    %418 = vrot.lane.b32.xlu0 %v342, 64
    %v419 = vpop.permute.xlu0 %418
    %420 = vrot.lane.b32.xlu0 %v343, 64
    %v421 = vpop.permute.xlu0 %420
    %v424 = vadd.f32 %v416, %v419
    %v425 = vadd.f32 %v417, %v421
    %426 = vrot.lane.b32.xlu0 %v354, 32
    %v427 = vpop.permute.xlu0 %426
    %428 = vrot.lane.b32.xlu0 %v355, 32
    %v429 = vpop.permute.xlu0 %428
    %v432 = vadd.f32 %v424, %v427
    %v433 = vadd.f32 %v425, %v429
    %v434 = vmax.f32 %v432, 0.0
    %v435 = vmax.f32 %v433, 0.0
    %v436 = vadd.f32 %v408, %v434
    %v437 = vadd.f32 %v409, %v435
    %440 = vrot.lane.b32.xlu0 %v340, 96
    %v441 = vpop.permute.xlu0 %440
    %442 = vrot.lane.b32.xlu0 %v341, 96
    %v443 = vpop.permute.xlu0 %442
    %v446 = vadd.f32 %v342, %v441
    %v447 = vadd.f32 %v343, %v443
    %v448 = vadd.f32 %v446, %v391
    %v449 = vadd.f32 %v447, %v393
    %v450 = vadd.f32 %v448, %v427
    %v451 = vadd.f32 %v449, %v429
    %v452 = vmax.f32 %v450, 0.0
    %v453 = vmax.f32 %v451, 0.0
    %v454 = vadd.f32 %v436, %v452
    %v455 = vadd.f32 %v437, %v453
    %v456 = vadd.f32 %v342, %v383
    %v457 = vadd.f32 %v343, %v385
    %458 = vrot.lane.b32.xlu0 %v340, 64
    %v459 = vpop.permute.xlu0 %458
    %460 = vrot.lane.b32.xlu0 %v341, 64
    %v461 = vpop.permute.xlu0 %460
    %v464 = vadd.f32 %v456, %v459
    %v465 = vadd.f32 %v457, %v461
    %v466 = vadd.f32 %v464, %v371
    %v467 = vadd.f32 %v465, %v373
    %v468 = vmax.f32 %v466, 0.0
    %v469 = vmax.f32 %v467, 0.0
    %v470 = vadd.f32 %v454, %v468
    %v471 = vadd.f32 %v455, %v469
    %v472 = vadd.f32 %v342, %v411
    %v473 = vadd.f32 %v343, %v413
    %v474 = vadd.f32 %v472, %v359
    %v475 = vadd.f32 %v473, %v361
    %476 = vrot.lane.b32.xlu0 %v340, 32
    %v477 = vpop.permute.xlu0 %476
    %478 = vrot.lane.b32.xlu0 %v341, 32
    %v479 = vpop.permute.xlu0 %478
    %v482 = vadd.f32 %v474, %v477
    %v483 = vadd.f32 %v475, %v479
    %v484 = vmax.f32 %v482, 0.0
    %v485 = vmax.f32 %v483, 0.0
    %v486 = vadd.f32 %v470, %v484
    %v487 = vadd.f32 %v471, %v485
    %v488 = vadd.f32 %v354, %v441
    %v489 = vadd.f32 %v355, %v443
    %v490 = vadd.f32 %v488, %v419
    %v491 = vadd.f32 %v489, %v421
    %v492 = vadd.f32 %v490, %v371
    %v493 = vadd.f32 %v491, %v373
    %v494 = vmax.f32 %v492, 0.0
    %v495 = vmax.f32 %v493, 0.0
    %v496 = vadd.f32 %v486, %v494
    %v497 = vadd.f32 %v487, %v495
    %v498 = vadd.f32 %v354, %v347
    %v499 = vadd.f32 %v355, %v349
    %v500 = vadd.f32 %v498, %v391
    %v501 = vadd.f32 %v499, %v393
    %v502 = vadd.f32 %v500, %v477
    %v503 = vadd.f32 %v501, %v479
    %v504 = vmax.f32 %v502, 0.0
    %v505 = vmax.f32 %v503, 0.0
    %v506 = vadd.f32 %v496, %v504
    %v507 = vadd.f32 %v497, %v505
    %v508 = vadd.f32 %v354, %v411
    %v509 = vadd.f32 %v355, %v413
    %v510 = vadd.f32 %v508, %v459
    %v511 = vadd.f32 %v509, %v461
    %v512 = vadd.f32 %v510, %v399
    %v513 = vadd.f32 %v511, %v401
    %v514 = vmax.f32 %v512, 0.0
    %v515 = vmax.f32 %v513, 0.0
    %v516 = vadd.f32 %v506, %v514
    %v517 = vadd.f32 %v507, %v515
    %v518 = vadd.f32 %v366, %v441
    %v519 = vadd.f32 %v367, %v443
    %v520 = vadd.f32 %v518, %v359
    %v521 = vadd.f32 %v519, %v361
    %v522 = vadd.f32 %v520, %v399
    %v523 = vadd.f32 %v521, %v401
    %v524 = vmax.f32 %v522, 0.0
    %v525 = vmax.f32 %v523, 0.0
    %v526 = vadd.f32 %v516, %v524
    %v527 = vadd.f32 %v517, %v525
    %v528 = vadd.f32 %v366, %v347
    %v529 = vadd.f32 %v367, %v349
    %v530 = vadd.f32 %v528, %v459
    %v531 = vadd.f32 %v529, %v461
    %v532 = vadd.f32 %v530, %v427
    %v533 = vadd.f32 %v531, %v429
    %v534 = vmax.f32 %v532, 0.0
    %v535 = vmax.f32 %v533, 0.0
    %v536 = vadd.f32 %v526, %v534
    %v537 = vadd.f32 %v527, %v535
    %v538 = vadd.f32 %v366, %v383
    %v539 = vadd.f32 %v367, %v385
    %v540 = vadd.f32 %v538, %v419
    %v541 = vadd.f32 %v539, %v421
    %v542 = vadd.f32 %v540, %v477
    %v543 = vadd.f32 %v541, %v479
    %v544 = vmax.f32 %v542, 0.0
    %v545 = vmax.f32 %v543, 0.0
    %v546 = vadd.f32 %v536, %v544
    %v547 = vadd.f32 %v537, %v545
    %v548 = vmul.f32 %v546, 0.33333334
    %v549 = vmul.f32 %v547, 0.33333334
    %v550 = vld [vmem:[#allocation8] sm:$0xff]
    %v551 = vld [vmem:[#allocation8 + $0x8] sm:$0xff]
    %v552 = vld [vmem:[#allocation8 + $0x10] sm:$0xff]
    %v553 = vld [vmem:[#allocation8 + $0x18] sm:$0xff]
    %v554 = vld [vmem:[%s4] sm:$0x1]
    %v556 = vlaneseq
    %v557 = vshrl.u32 %v556, 7
    %v558 = vsub.s32 0, %v557
    %v559 = vrot.slane %v554, %v558
    %vm561 = vcmask 261120
    %v563 = vsel %vm561, %v548, 0
    %v566 = vsel %vm561, %v549, 0
    %568 = vmatprep.subr.mxu0 0.0
    %569 = vmatpush1.msra.mxu0 %v550
    %570 = vmatprep.subr.mxu0 0.0
    %571 = vmatpush1.msra.mxu0 %v551
    %572 = vmatprep.subr.mxu0 0.0
    %573 = vmatpush1.msra.mxu0 %v552
    %574 = vmatprep.subr.mxu0 0.0
    %575 = vmatpush1.msra.mxu0 %v553
    %576 = vmatprep.subr.mxu0 0.0
    %577 = vmatpush1.msra.mxu0 0.0
    %578 = vmatprep.subr.mxu0 0.0
    %579 = vmatpush1.msra.mxu0 0.0
    %580 = vmatprep.subr.mxu0 0.0
    %581 = vmatpush1.msra.mxu0 0.0
    %582 = vmatprep.subr.mxu0 0.0
    %583 = vmatpush1.msra.mxu0 0.0
    %584 = vmatprep.subr.mxu0 0.0
    %585 = vmatpush1.msra.mxu0 0.0
    %586 = vmatprep.subr.mxu0 0.0
    %587 = vmatpush1.msra.mxu0 0.0
    %588 = vmatprep.subr.mxu0 0.0
    %589 = vmatpush1.msra.mxu0 0.0
    %590 = vmatprep.subr.mxu0 0.0
    %591 = vmatpush1.msra.mxu0 0.0
    %592 = vmatprep.subr.mxu0 0.0
    %593 = vmatpush1.msra.mxu0 0.0
    %594 = vmatprep.subr.mxu0 0.0
    %595 = vmatpush1.msra.mxu0 0.0
    %596 = vmatprep.subr.mxu0 0.0
    %597 = vmatpush1.msra.mxu0 0.0
    %598 = vmatprep.subr.mxu0 0.0
    %599 = vmatpush1.msra.mxu0 0.0
    %600 = vmatprep.subr.mxu0 0.0
    %601 = vmatpush1.msra.mxu0 0.0
    %602 = vmatprep.subr.mxu0 0.0
    %603 = vmatpush1.msra.mxu0 0.0
    %604 = vmatprep.subr.mxu0 0.0
    %605 = vmatpush1.msra.mxu0 0.0
    %606 = vmatprep.subr.mxu0 0.0
    %607 = vmatpush1.msra.mxu0 0.0
    %608 = vmatprep.subr.mxu0 0.0
    %609 = vmatpush1.msra.mxu0 0.0
    %610 = vmatprep.subr.mxu0 0.0
    %611 = vmatpush1.msra.mxu0 0.0
    %612 = vmatprep.subr.mxu0 0.0
    %613 = vmatpush1.msra.mxu0 0.0
    %614 = vmatprep.subr.mxu0 0.0
    %615 = vmatpush1.msra.mxu0 0.0
    %616 = vmatprep.subr.mxu0 0.0
    %617 = vmatpush1.msra.mxu0 0.0
    %618 = vmatprep.subr.mxu0 0.0
    %619 = vmatpush1.msra.mxu0 0.0
    %620 = vmatprep.subr.mxu0 0.0
    %621 = vmatpush1.msra.mxu0 0.0
    %622 = vmatprep.subr.mxu0 0.0
    %623 = vmatpush1.msra.mxu0 0.0
    %624 = vmatprep.subr.mxu0 0.0
    %625 = vmatpush1.msra.mxu0 0.0
    %626 = vmatprep.subr.mxu0 0.0
    %627 = vmatpush1.msra.mxu0 0.0
    %628 = vmatprep.subr.mxu0 0.0
    %629 = vmatpush1.msra.mxu0 0.0
    %630 = vmatprep.subr.mxu0 0.0
    %631 = vmatpush1.msra.mxu0 0.0
    %632 = vmatprep.mubr.f32.mxu0 0.0
    %633 = vmatmul.mubr.f32.gmra.mrb[0].mxu0 %v563
    %v634 = vpop.f32.mrb[0].mxu0
    %v635 = vadd.f32 %v559, %v634
    %v636 = vpop.f32.mrb[0].mxu0
    %637 = vmatprep.mubr.f32.mxu0 0.0
    %638 = vmatmul.mubr.f32.gmra.mrb[0].mxu0 %v566
    %v639 = vpop.f32.mrb[0].mxu0
    %v640 = vadd.f32 %v559, %v639
    %v641 = vpop.f32.mrb[0].mxu0
    %642 = vdwg.mxu0
    %v643 = vmax.f32 %v635, 0.0
    %v644 = vmax.f32 %v640, 0.0
    %v645 = vld [vmem:[#allocation9] sm:$0xff]
    %v646 = vld [vmem:[#allocation9 + $0x8] sm:$0xff]
    %v647 = vld [vmem:[#allocation9 + $0x10] sm:$0xff]
    %v648 = vld [vmem:[#allocation9 + $0x18] sm:$0xff]
    %v649 = vld [vmem:[%s6] sm:$0x1]
    %v651 = vlaneseq
    %v652 = vshrl.u32 %v651, 7
    %v653 = vsub.s32 0, %v652
    %v654 = vrot.slane %v649, %v653
    %v657 = vsel %vm561, %v643, 0
    %v660 = vsel %vm561, %v644, 0
    %662 = vmatprep.subr.mxu0 0.0
    %663 = vmatpush1.msra.mxu0 %v645
    %664 = vmatprep.subr.mxu0 0.0
    %665 = vmatpush1.msra.mxu0 %v646
    %666 = vmatprep.subr.mxu0 0.0
    %667 = vmatpush1.msra.mxu0 %v647
    %668 = vmatprep.subr.mxu0 0.0
    %669 = vmatpush1.msra.mxu0 %v648
    %670 = vmatprep.subr.mxu0 0.0
    %671 = vmatpush1.msra.mxu0 0.0
    %672 = vmatprep.subr.mxu0 0.0
    %673 = vmatpush1.msra.mxu0 0.0
    %674 = vmatprep.subr.mxu0 0.0
    %675 = vmatpush1.msra.mxu0 0.0
    %676 = vmatprep.subr.mxu0 0.0
    %677 = vmatpush1.msra.mxu0 0.0
    %678 = vmatprep.subr.mxu0 0.0
    %679 = vmatpush1.msra.mxu0 0.0
    %680 = vmatprep.subr.mxu0 0.0
    %681 = vmatpush1.msra.mxu0 0.0
    %682 = vmatprep.subr.mxu0 0.0
    %683 = vmatpush1.msra.mxu0 0.0
    %684 = vmatprep.subr.mxu0 0.0
    %685 = vmatpush1.msra.mxu0 0.0
    %686 = vmatprep.subr.mxu0 0.0
    %687 = vmatpush1.msra.mxu0 0.0
    %688 = vmatprep.subr.mxu0 0.0
    %689 = vmatpush1.msra.mxu0 0.0
    %690 = vmatprep.subr.mxu0 0.0
    %691 = vmatpush1.msra.mxu0 0.0
    %692 = vmatprep.subr.mxu0 0.0
    %693 = vmatpush1.msra.mxu0 0.0
    %694 = vmatprep.subr.mxu0 0.0
    %695 = vmatpush1.msra.mxu0 0.0
    %696 = vmatprep.subr.mxu0 0.0
    %697 = vmatpush1.msra.mxu0 0.0
    %698 = vmatprep.subr.mxu0 0.0
    %699 = vmatpush1.msra.mxu0 0.0
    %700 = vmatprep.subr.mxu0 0.0
    %701 = vmatpush1.msra.mxu0 0.0
    %702 = vmatprep.subr.mxu0 0.0
    %703 = vmatpush1.msra.mxu0 0.0
    %704 = vmatprep.subr.mxu0 0.0
    %705 = vmatpush1.msra.mxu0 0.0
    %706 = vmatprep.subr.mxu0 0.0
    %707 = vmatpush1.msra.mxu0 0.0
    %708 = vmatprep.subr.mxu0 0.0
    %709 = vmatpush1.msra.mxu0 0.0
    %710 = vmatprep.subr.mxu0 0.0
    %711 = vmatpush1.msra.mxu0 0.0
    %712 = vmatprep.subr.mxu0 0.0
    %713 = vmatpush1.msra.mxu0 0.0
    %714 = vmatprep.subr.mxu0 0.0
    %715 = vmatpush1.msra.mxu0 0.0
    %716 = vmatprep.subr.mxu0 0.0
    %717 = vmatpush1.msra.mxu0 0.0
    %718 = vmatprep.subr.mxu0 0.0
    %719 = vmatpush1.msra.mxu0 0.0
    %720 = vmatprep.subr.mxu0 0.0
    %721 = vmatpush1.msra.mxu0 0.0
    %722 = vmatprep.subr.mxu0 0.0
    %723 = vmatpush1.msra.mxu0 0.0
    %724 = vmatprep.subr.mxu0 0.0
    %725 = vmatpush1.msra.mxu0 0.0
    %726 = vmatprep.mubr.f32.mxu0 0.0
    %727 = vmatmul.mubr.f32.gmra.mrb[0].mxu0 %v657
    %v728 = vpop.f32.mrb[0].mxu0
    %v729 = vadd.f32 %v654, %v728
    %v730 = vpop.f32.mrb[0].mxu0
    %731 = vmatprep.mubr.f32.mxu0 0.0
    %732 = vmatmul.mubr.f32.gmra.mrb[0].mxu0 %v660
    %v733 = vpop.f32.mrb[0].mxu0
    %v734 = vadd.f32 %v654, %v733
    %v735 = vpop.f32.mrb[0].mxu0
    %736 = vdwg.mxu0
    %737 = vst.msk [vmem:[#allocation11] sm:$0xff] %vm561, %v729
    %738 = vst.msk [vmem:[#allocation11 + $0x8] sm:$0xff] %vm561, %v734
    // Predicated region
    $region46: #{tpu_custom_call.1} parent=1 // pred_check
      _
    $region47: #{tpu_custom_call.1} parent=1 // pred_check_branch
      %740 = sbr.rel (0) target = $region49
    $region48: #{tpu_custom_call.1} parent=1 // pred_region
      %s742 = ssub.s32 256, 256
      %743 = vsyncadd [#allocation5], %s742
      %s744 = sshll.u32 [#allocation11], 4
      %s745 = int_to_ptr.vmem [resolvable:$true] %s744
      %750 = dma.vmem_to_hbm [thread:$0]  %s745, 256, %s7, [#allocation5], 128, 128, 8
    $region49: #{tpu_custom_call.1} parent=1 // pred_fallthru
      _
    // Predicated region
    $region50: #{tpu_custom_call.1} parent=1 // pred_check
      _
    $region51: #{tpu_custom_call.1} parent=1 // pred_check_branch
      %752 = sbr.rel (0) target = $region53
    $region52: #{tpu_custom_call.1} parent=1 // pred_region
      %753 = dma.done [#allocation5], 256
    $region53: #{tpu_custom_call.1} parent=1 // pred_fallthru
      _
    %754 = vsyncpa [#allocation4], 1
    %755 = vsyncpa [#allocation7], 1
    %756 = vsyncpa [#allocation10], 1
    %757 = vsyncpa [#allocation5], 1

</llo_original>
